<compile_context>
chip_gen: v6e
topology: v6e:2x2x1
jax: 0.10.0
libtpu: 0.0.40
codegen_flags: <defaults>
</compile_context>

<pallas_src>
import jax
import jax.numpy as jnp
import numpy as np
from jax.experimental import pallas as pl
from jax.experimental.pallas import tpu as pltpu

B, A, DS, H, S, I = 8, 8, 16, 32, 4, 3   # batch, action dim, state dim, hidden, samples, iters
LR = 0.1

LANES = 128
AP = LANES // S          # padded per-sample action block width (32); A <= AP
SA = S * AP              # packed (padded) action width  = 128 -> one full vreg row
SH = S * H               # packed hidden width           = 128 -> one full vreg row
assert A <= AP and SA == LANES and SH == LANES


def gbi_kernel(state_ref, mean0_ref, logstd0_ref, eps_ref,
               w1s_ref, w1afwd_ref, w1abwd_ref, b1_ref, w2_ref,
               mean_out_ref, logstd_out_ref, obj_out_ref):
    inv_s = 1.0 / S

    # ---- iteration-invariant work (hoisted) ----
    # state -> hidden pre-activation, already sample-tiled via the lane-tiled W1s/b1: one
    # [8,16]x[16,128] MXU matmul, full 128-lane output.
    z_base = jnp.dot(state_ref[...], w1s_ref[...],
                     preferred_element_type=jnp.float32) + b1_ref[...]          # [B, S*H]

    w1a_fwd = w1afwd_ref[...]                     # [S*AP, S*H] block-diagonal (fwd)
    w1a_bwd = w1abwd_ref[...]                     # [S*H, S*AP] block-diagonal transpose (bwd)
    # hoist the sublane broadcasts out of the unrolled loop (JAX does not CSE broadcast_in_dim)
    w2_b = jnp.broadcast_to(w2_ref[...], (B, SH))     # [B, S*H] lane-tiled w2
    w2_dz = (-inv_s) * w2_b                           # loop-invariant backward scale

    def block_sum_bcast(x):
        """[B, S*AP=128]: make every AP-lane block the sum over the S sample blocks.
        Two full-vreg lane rotations (XLU) + two adds; result is broadcast across blocks so
        the lane-packed dist params never need re-tiling."""
        y = x + pltpu.roll(x, 2 * AP, 1)
        return y + pltpu.roll(y, AP, 1)

    mean = mean0_ref[...]                         # [B, S*AP], sample blocks identical
    logstd = logstd0_ref[...]                     # [B, S*AP]
    obj_cols = []

    # n_inf_iters loop fully unrolled inside one kernel invocation (dist params carried as
    # values) — no grid, no per-step pipeline overhead.
    for it in range(I):
        sigma = jnp.exp(logstd)                   # 1 EUP vreg
        eps_it = eps_ref[it]                      # [B, S*AP] lane-packed noise (pad lanes 0)

        # reparameterized samples for all S draws: single full-vreg FMA
        a_pk = mean + sigma * eps_it              # [B, S*AP]

        # forward Q-MLP for all samples: one [8,128]x[128,128] MXU matmul + one full-vreg tanh
        z = z_base + jnp.dot(a_pk, w1a_fwd, preferred_element_type=jnp.float32)  # [B, S*H]
        h = jnp.tanh(z)

        # objective (without the action-independent b2; folded in the wrapper):
        # -(1/S) sum_s q_s  ==  -(1/S) * lane-sum(h * tiled(w2))
        hw = h * w2_b
        obj_cols.append(-inv_s * jnp.sum(hw, axis=-1, keepdims=True))            # [B, 1]

        # analytic backward through the MLP + reparameterization
        dz = (1.0 - h * h) * w2_dz                                               # [B, S*H]
        da = jnp.dot(dz, w1a_bwd, preferred_element_type=jnp.float32)            # [B, S*AP]
        g_mean = block_sum_bcast(da)                              # sum over samples, bcast
        g_logstd = sigma * block_sum_bcast(da * eps_it)

        # SGD step on the approximate-posterior parameters (blocks stay identical)
        mean = mean - LR * g_mean
        logstd = logstd - LR * g_logstd

    mean_out_ref[...] = mean[:, :A]               # extract sample-block 0 (lanes 0:A)
    logstd_out_ref[...] = logstd[:, :A]
    # NOTE: kept as a [B, I] single store (lane-reduced [B,1] columns store in their natural
    # layout); the reviewer's [I, B] row-store needs a sublane->lane relayout of the reduce
    # result for a negligible 3-lane epilogue win, so we keep the proven form.
    obj_out_ref[...] = jnp.concatenate(obj_cols, axis=1)          # [B, I]


def gradient_based_inference(state, mean0, logstd0, eps, W1s, W1a, b1, w2, b2):
    # ---- one-time lane packing / padding of inputs and loop-invariant weights ----
    def pad_tile(x):                              # [B, A] -> [B, S*AP], identical sample blocks
        return jnp.tile(jnp.pad(x, ((0, 0), (0, AP - A))), (1, S))

    mean0_p = pad_tile(mean0)
    logstd0_p = pad_tile(logstd0)

    # eps[i, s, b, a] -> eps_p[i, b, s*AP + a], pad lanes zero
    eps_p = jnp.pad(jnp.transpose(eps, (0, 2, 1, 3)),
                    ((0, 0), (0, 0), (0, 0), (0, AP - A))).reshape(I, B, SA)

    W1a_pad = jnp.pad(W1a, ((0, AP - A), (0, 0)))                 # [AP, H]
    eye_s = jnp.eye(S, dtype=jnp.float32)
    w1a_fwd = jnp.kron(eye_s, W1a_pad)                            # [S*AP, S*H] block-diagonal
    w1a_bwd = jnp.kron(eye_s, W1a_pad.T)                          # [S*H, S*AP] block-diag transpose

    w1s_t = jnp.tile(W1s, (1, S))                                 # [DS, S*H]
    b1_t = jnp.tile(b1.reshape(1, H), (1, S))                     # [1, S*H]
    w2_t = jnp.tile(w2.reshape(1, H), (1, S))                     # [1, S*H]

    vmem = pl.BlockSpec(memory_space=pltpu.MemorySpace.VMEM)

    # TODO(synk): if callers run many independent B=8 inference problems, stack them on a
    # leading "parallel" grid axis (megacore on v7x) / grow B instead of launching more kernels.
    mean_f, logstd_f, obj_bi = pl.pallas_call(
        gbi_kernel,
        in_specs=[vmem] * 9,
        out_specs=(vmem, vmem, vmem),
        out_shape=(
            jax.ShapeDtypeStruct((B, A), jnp.float32),            # final mean
            jax.ShapeDtypeStruct((B, A), jnp.float32),            # final log_std
            jax.ShapeDtypeStruct((B, I), jnp.float32),            # objectives (without b2)
        ),
    )(state, mean0_p, logstd0_p, eps_p, w1s_t, w1a_fwd, w1a_bwd, b1_t, w2_t)

    # b2 is constant w.r.t. the actions: fold it into the objective outside the kernel.
    objs = (jnp.transpose(obj_bi) - b2)[:, :, None]               # [I, B, 1]
    return mean_f, logstd_f, objs


def reference(state, mean0, logstd0, eps_all, W1s, W1a, b1, w2, b2):
    """Pure-JAX reference using autodiff (mirrors the PyTorch SGD inference loop)."""
    mean, logstd = mean0, logstd0
    objs = []
    for it in range(I):
        eps = eps_all[it]

        def loss_fn(m, ls):
            a = m[None] + jnp.exp(ls)[None] * eps                       # [S, B, A]
            z = (state @ W1s + b1)[None] + jnp.einsum('sba,ah->sbh', a, W1a)
            h = jnp.tanh(z)
            q = jnp.einsum('sbh,h->sb', h, w2)[..., None] + b2          # [S, B, 1]
            obj = -q.mean(axis=0)                                       # [B, 1]
            return obj.sum(), obj

        (_, obj), grads = jax.value_and_grad(loss_fn, argnums=(0, 1), has_aux=True)(mean, logstd)
        objs.append(obj)
        mean = mean - LR * grads[0]
        logstd = logstd - LR * grads[1]
    return mean, logstd, jnp.stack(objs)


if __name__ == "__main__":
    key = jax.random.PRNGKey(0)
    ks = jax.random.split(key, 8)
    state = jax.random.normal(ks[0], (B, DS), jnp.float32)
    mean0 = 0.1 * jax.random.normal(ks[1], (B, A), jnp.float32)
    logstd0 = -0.5 + 0.05 * jax.random.normal(ks[2], (B, A), jnp.float32)
    eps = jax.random.normal(ks[3], (I, S, B, A), jnp.float32)
    W1s = 0.2 * jax.random.normal(ks[4], (DS, H), jnp.float32)
    W1a = 0.2 * jax.random.normal(ks[5], (A, H), jnp.float32)
    b1 = 0.05 * jax.random.normal(ks[6], (H,), jnp.float32)
    w2 = 0.3 * jax.random.normal(ks[7], (H,), jnp.float32)
    b2 = jnp.array(0.1, jnp.float32)

    mean_f, logstd_f, objs = jax.block_until_ready(
        gradient_based_inference(state, mean0, logstd0, eps, W1s, W1a, b1, w2, b2))

    mean_r, logstd_r, objs_r = reference(state, mean0, logstd0, eps, W1s, W1a, b1, w2, b2)

    assert np.allclose(np.asarray(mean_f), np.asarray(mean_r), atol=1e-4, rtol=1e-4)
    assert np.allclose(np.asarray(logstd_f), np.asarray(logstd_r), atol=1e-4, rtol=1e-4)
    assert np.allclose(np.asarray(objs), np.asarray(objs_r), atol=1e-4, rtol=1e-4)

    print("KERNEL_OK")
</pallas_src>

<mosaic_0001>
module attributes {stable_mosaic.version = 11 : i64} {
  func.func @gbi_kernel(%arg0: memref<8x16xf32, #tpu.memory_space<vmem>>, %arg1: memref<8x128xf32, #tpu.memory_space<vmem>>, %arg2: memref<8x128xf32, #tpu.memory_space<vmem>>, %arg3: memref<3x8x128xf32, #tpu.memory_space<vmem>>, %arg4: memref<16x128xf32, #tpu.memory_space<vmem>>, %arg5: memref<128x128xf32, #tpu.memory_space<vmem>>, %arg6: memref<128x128xf32, #tpu.memory_space<vmem>>, %arg7: memref<1x128xf32, #tpu.memory_space<vmem>>, %arg8: memref<1x128xf32, #tpu.memory_space<vmem>>, %arg9: memref<8x8xf32, #tpu.memory_space<vmem>>, %arg10: memref<8x8xf32, #tpu.memory_space<vmem>>, %arg11: memref<8x3xf32, #tpu.memory_space<vmem>>) attributes {dimension_semantics = [], scalar_prefetch = 0 : i64, scratch_operands = 0 : i64, tpu.core_type = #tpu.core_type<tc>} {
    %c0 = arith.constant 0 : index
    %c0_0 = arith.constant 0 : index
    %0 = vector.load %arg0[%c0, %c0_0] : memref<8x16xf32, #tpu.memory_space<vmem>>, vector<8x16xf32>
    %c0_1 = arith.constant 0 : index
    %c0_2 = arith.constant 0 : index
    %1 = vector.load %arg4[%c0_1, %c0_2] : memref<16x128xf32, #tpu.memory_space<vmem>>, vector<16x128xf32>
    %cst = arith.constant dense<0.000000e+00> : vector<8x128xf32>
    %2 = tpu.matmul %0, %1, %cst {dimension_numbers = #tpu.dot_dimension_numbers<[1], [0], [0], [1], [0, 0, 1, 1], [], []>} : vector<8x16xf32>, vector<16x128xf32>, vector<8x128xf32> -> vector<8x128xf32>
    %c0_3 = arith.constant 0 : index
    %c0_4 = arith.constant 0 : index
    %3 = vector.load %arg7[%c0_3, %c0_4] : memref<1x128xf32, #tpu.memory_space<vmem>>, vector<1x128xf32>
    %4 = vector.broadcast %3 : vector<1x128xf32> to vector<8x128xf32>
    %5 = arith.addf %2, %4 : vector<8x128xf32>
    %c0_5 = arith.constant 0 : index
    %c0_6 = arith.constant 0 : index
    %6 = vector.load %arg5[%c0_5, %c0_6] : memref<128x128xf32, #tpu.memory_space<vmem>>, vector<128x128xf32>
    %c0_7 = arith.constant 0 : index
    %c0_8 = arith.constant 0 : index
    %7 = vector.load %arg6[%c0_7, %c0_8] : memref<128x128xf32, #tpu.memory_space<vmem>>, vector<128x128xf32>
    %c0_9 = arith.constant 0 : index
    %c0_10 = arith.constant 0 : index
    %8 = vector.load %arg8[%c0_9, %c0_10] : memref<1x128xf32, #tpu.memory_space<vmem>>, vector<1x128xf32>
    %9 = vector.shape_cast %8 : vector<1x128xf32> to vector<1x128xf32>
    %10 = vector.broadcast %9 : vector<1x128xf32> to vector<8x128xf32>
    %cst_11 = arith.constant -2.500000e-01 : f32
    %11 = vector.broadcast %cst_11 : f32 to vector<8x128xf32>
    %12 = arith.mulf %11, %10 : vector<8x128xf32>
    %c0_12 = arith.constant 0 : index
    %c0_13 = arith.constant 0 : index
    %13 = vector.load %arg1[%c0_12, %c0_13] : memref<8x128xf32, #tpu.memory_space<vmem>>, vector<8x128xf32>
    %c0_14 = arith.constant 0 : index
    %c0_15 = arith.constant 0 : index
    %14 = vector.load %arg2[%c0_14, %c0_15] : memref<8x128xf32, #tpu.memory_space<vmem>>, vector<8x128xf32>
    %15 = math.exp %14 : vector<8x128xf32>
    %c0_16 = arith.constant 0 : index
    %c0_17 = arith.constant 0 : index
    %c0_18 = arith.constant 0 : index
    %16 = vector.load %arg3[%c0_16, %c0_17, %c0_18] : memref<3x8x128xf32, #tpu.memory_space<vmem>>, vector<1x8x128xf32>
    %17 = vector.shape_cast %16 : vector<1x8x128xf32> to vector<8x128xf32>
    %18 = arith.mulf %15, %17 : vector<8x128xf32>
    %19 = arith.addf %13, %18 : vector<8x128xf32>
    %cst_19 = arith.constant dense<0.000000e+00> : vector<8x128xf32>
    %20 = tpu.matmul %19, %6, %cst_19 {dimension_numbers = #tpu.dot_dimension_numbers<[1], [0], [0], [1], [0, 0, 1, 1], [], []>} : vector<8x128xf32>, vector<128x128xf32>, vector<8x128xf32> -> vector<8x128xf32>
    %21 = arith.addf %5, %20 : vector<8x128xf32>
    %22 = math.tanh %21 : vector<8x128xf32>
    %23 = arith.mulf %22, %10 : vector<8x128xf32>
    %cst_20 = arith.constant dense<0.000000e+00> : vector<8xf32>
    %24 = vector.multi_reduction <add>, %23, %cst_20 [1] : vector<8x128xf32> to vector<8xf32>
    %25 = vector.shape_cast %24 : vector<8xf32> to vector<8x1xf32>
    %cst_21 = arith.constant -2.500000e-01 : f32
    %26 = vector.broadcast %cst_21 : f32 to vector<8x1xf32>
    %27 = arith.mulf %26, %25 : vector<8x1xf32>
    %28 = arith.mulf %22, %22 : vector<8x128xf32>
    %cst_22 = arith.constant 1.000000e+00 : f32
    %29 = vector.broadcast %cst_22 : f32 to vector<8x128xf32>
    %30 = arith.subf %29, %28 : vector<8x128xf32>
    %31 = arith.mulf %30, %12 : vector<8x128xf32>
    %cst_23 = arith.constant dense<0.000000e+00> : vector<8x128xf32>
    %32 = tpu.matmul %31, %7, %cst_23 {dimension_numbers = #tpu.dot_dimension_numbers<[1], [0], [0], [1], [0, 0, 1, 1], [], []>} : vector<8x128xf32>, vector<128x128xf32>, vector<8x128xf32> -> vector<8x128xf32>
    %c64_i32 = arith.constant 64 : i32
    %33 = tpu.dynamic_rotate %32 by %c64_i32 dim 1 : vector<8x128xf32>, i32 -> vector<8x128xf32>
    %34 = arith.addf %32, %33 : vector<8x128xf32>
    %c32_i32 = arith.constant 32 : i32
    %35 = tpu.dynamic_rotate %34 by %c32_i32 dim 1 : vector<8x128xf32>, i32 -> vector<8x128xf32>
    %36 = arith.addf %34, %35 : vector<8x128xf32>
    %37 = arith.mulf %32, %17 : vector<8x128xf32>
    %c64_i32_24 = arith.constant 64 : i32
    %38 = tpu.dynamic_rotate %37 by %c64_i32_24 dim 1 : vector<8x128xf32>, i32 -> vector<8x128xf32>
    %39 = arith.addf %37, %38 : vector<8x128xf32>
    %c32_i32_25 = arith.constant 32 : i32
    %40 = tpu.dynamic_rotate %39 by %c32_i32_25 dim 1 : vector<8x128xf32>, i32 -> vector<8x128xf32>
    %41 = arith.addf %39, %40 : vector<8x128xf32>
    %42 = arith.mulf %15, %41 : vector<8x128xf32>
    %cst_26 = arith.constant 1.000000e-01 : f32
    %43 = vector.broadcast %cst_26 : f32 to vector<8x128xf32>
    %44 = arith.mulf %43, %36 : vector<8x128xf32>
    %45 = arith.subf %13, %44 : vector<8x128xf32>
    %cst_27 = arith.constant 1.000000e-01 : f32
    %46 = vector.broadcast %cst_27 : f32 to vector<8x128xf32>
    %47 = arith.mulf %46, %42 : vector<8x128xf32>
    %48 = arith.subf %14, %47 : vector<8x128xf32>
    %49 = math.exp %48 : vector<8x128xf32>
    %c1 = arith.constant 1 : index
    %c0_28 = arith.constant 0 : index
    %c0_29 = arith.constant 0 : index
    %50 = vector.load %arg3[%c1, %c0_28, %c0_29] : memref<3x8x128xf32, #tpu.memory_space<vmem>>, vector<1x8x128xf32>
    %51 = vector.shape_cast %50 : vector<1x8x128xf32> to vector<8x128xf32>
    %52 = arith.mulf %49, %51 : vector<8x128xf32>
    %53 = arith.addf %45, %52 : vector<8x128xf32>
    %cst_30 = arith.constant dense<0.000000e+00> : vector<8x128xf32>
    %54 = tpu.matmul %53, %6, %cst_30 {dimension_numbers = #tpu.dot_dimension_numbers<[1], [0], [0], [1], [0, 0, 1, 1], [], []>} : vector<8x128xf32>, vector<128x128xf32>, vector<8x128xf32> -> vector<8x128xf32>
    %55 = arith.addf %5, %54 : vector<8x128xf32>
    %56 = math.tanh %55 : vector<8x128xf32>
    %57 = arith.mulf %56, %10 : vector<8x128xf32>
    %cst_31 = arith.constant dense<0.000000e+00> : vector<8xf32>
    %58 = vector.multi_reduction <add>, %57, %cst_31 [1] : vector<8x128xf32> to vector<8xf32>
    %59 = vector.shape_cast %58 : vector<8xf32> to vector<8x1xf32>
    %cst_32 = arith.constant -2.500000e-01 : f32
    %60 = vector.broadcast %cst_32 : f32 to vector<8x1xf32>
    %61 = arith.mulf %60, %59 : vector<8x1xf32>
    %62 = arith.mulf %56, %56 : vector<8x128xf32>
    %cst_33 = arith.constant 1.000000e+00 : f32
    %63 = vector.broadcast %cst_33 : f32 to vector<8x128xf32>
    %64 = arith.subf %63, %62 : vector<8x128xf32>
    %65 = arith.mulf %64, %12 : vector<8x128xf32>
    %cst_34 = arith.constant dense<0.000000e+00> : vector<8x128xf32>
    %66 = tpu.matmul %65, %7, %cst_34 {dimension_numbers = #tpu.dot_dimension_numbers<[1], [0], [0], [1], [0, 0, 1, 1], [], []>} : vector<8x128xf32>, vector<128x128xf32>, vector<8x128xf32> -> vector<8x128xf32>
    %c64_i32_35 = arith.constant 64 : i32
    %67 = tpu.dynamic_rotate %66 by %c64_i32_35 dim 1 : vector<8x128xf32>, i32 -> vector<8x128xf32>
    %68 = arith.addf %66, %67 : vector<8x128xf32>
    %c32_i32_36 = arith.constant 32 : i32
    %69 = tpu.dynamic_rotate %68 by %c32_i32_36 dim 1 : vector<8x128xf32>, i32 -> vector<8x128xf32>
    %70 = arith.addf %68, %69 : vector<8x128xf32>
    %71 = arith.mulf %66, %51 : vector<8x128xf32>
    %c64_i32_37 = arith.constant 64 : i32
    %72 = tpu.dynamic_rotate %71 by %c64_i32_37 dim 1 : vector<8x128xf32>, i32 -> vector<8x128xf32>
    %73 = arith.addf %71, %72 : vector<8x128xf32>
    %c32_i32_38 = arith.constant 32 : i32
    %74 = tpu.dynamic_rotate %73 by %c32_i32_38 dim 1 : vector<8x128xf32>, i32 -> vector<8x128xf32>
    %75 = arith.addf %73, %74 : vector<8x128xf32>
    %76 = arith.mulf %49, %75 : vector<8x128xf32>
    %cst_39 = arith.constant 1.000000e-01 : f32
    %77 = vector.broadcast %cst_39 : f32 to vector<8x128xf32>
    %78 = arith.mulf %77, %70 : vector<8x128xf32>
    %79 = arith.subf %45, %78 : vector<8x128xf32>
    %cst_40 = arith.constant 1.000000e-01 : f32
    %80 = vector.broadcast %cst_40 : f32 to vector<8x128xf32>
    %81 = arith.mulf %80, %76 : vector<8x128xf32>
    %82 = arith.subf %48, %81 : vector<8x128xf32>
    %83 = math.exp %82 : vector<8x128xf32>
    %c2 = arith.constant 2 : index
    %c0_41 = arith.constant 0 : index
    %c0_42 = arith.constant 0 : index
    %84 = vector.load %arg3[%c2, %c0_41, %c0_42] : memref<3x8x128xf32, #tpu.memory_space<vmem>>, vector<1x8x128xf32>
    %85 = vector.shape_cast %84 : vector<1x8x128xf32> to vector<8x128xf32>
    %86 = arith.mulf %83, %85 : vector<8x128xf32>
    %87 = arith.addf %79, %86 : vector<8x128xf32>
    %cst_43 = arith.constant dense<0.000000e+00> : vector<8x128xf32>
    %88 = tpu.matmul %87, %6, %cst_43 {dimension_numbers = #tpu.dot_dimension_numbers<[1], [0], [0], [1], [0, 0, 1, 1], [], []>} : vector<8x128xf32>, vector<128x128xf32>, vector<8x128xf32> -> vector<8x128xf32>
    %89 = arith.addf %5, %88 : vector<8x128xf32>
    %90 = math.tanh %89 : vector<8x128xf32>
    %91 = arith.mulf %90, %10 : vector<8x128xf32>
    %cst_44 = arith.constant dense<0.000000e+00> : vector<8xf32>
    %92 = vector.multi_reduction <add>, %91, %cst_44 [1] : vector<8x128xf32> to vector<8xf32>
    %93 = vector.shape_cast %92 : vector<8xf32> to vector<8x1xf32>
    %cst_45 = arith.constant -2.500000e-01 : f32
    %94 = vector.broadcast %cst_45 : f32 to vector<8x1xf32>
    %95 = arith.mulf %94, %93 : vector<8x1xf32>
    %96 = arith.mulf %90, %90 : vector<8x128xf32>
    %cst_46 = arith.constant 1.000000e+00 : f32
    %97 = vector.broadcast %cst_46 : f32 to vector<8x128xf32>
    %98 = arith.subf %97, %96 : vector<8x128xf32>
    %99 = arith.mulf %98, %12 : vector<8x128xf32>
    %cst_47 = arith.constant dense<0.000000e+00> : vector<8x128xf32>
    %100 = tpu.matmul %99, %7, %cst_47 {dimension_numbers = #tpu.dot_dimension_numbers<[1], [0], [0], [1], [0, 0, 1, 1], [], []>} : vector<8x128xf32>, vector<128x128xf32>, vector<8x128xf32> -> vector<8x128xf32>
    %c64_i32_48 = arith.constant 64 : i32
    %101 = tpu.dynamic_rotate %100 by %c64_i32_48 dim 1 : vector<8x128xf32>, i32 -> vector<8x128xf32>
    %102 = arith.addf %100, %101 : vector<8x128xf32>
    %c32_i32_49 = arith.constant 32 : i32
    %103 = tpu.dynamic_rotate %102 by %c32_i32_49 dim 1 : vector<8x128xf32>, i32 -> vector<8x128xf32>
    %104 = arith.addf %102, %103 : vector<8x128xf32>
    %105 = arith.mulf %100, %85 : vector<8x128xf32>
    %c64_i32_50 = arith.constant 64 : i32
    %106 = tpu.dynamic_rotate %105 by %c64_i32_50 dim 1 : vector<8x128xf32>, i32 -> vector<8x128xf32>
    %107 = arith.addf %105, %106 : vector<8x128xf32>
    %c32_i32_51 = arith.constant 32 : i32
    %108 = tpu.dynamic_rotate %107 by %c32_i32_51 dim 1 : vector<8x128xf32>, i32 -> vector<8x128xf32>
    %109 = arith.addf %107, %108 : vector<8x128xf32>
    %110 = arith.mulf %83, %109 : vector<8x128xf32>
    %cst_52 = arith.constant 1.000000e-01 : f32
    %111 = vector.broadcast %cst_52 : f32 to vector<8x128xf32>
    %112 = arith.mulf %111, %104 : vector<8x128xf32>
    %113 = arith.subf %79, %112 : vector<8x128xf32>
    %cst_53 = arith.constant 1.000000e-01 : f32
    %114 = vector.broadcast %cst_53 : f32 to vector<8x128xf32>
    %115 = arith.mulf %114, %110 : vector<8x128xf32>
    %116 = arith.subf %82, %115 : vector<8x128xf32>
    %117 = vector.extract_strided_slice %113 {offsets = [0, 0], sizes = [8, 8], strides = [1, 1]} : vector<8x128xf32> to vector<8x8xf32>
    %c0_54 = arith.constant 0 : index
    %c0_55 = arith.constant 0 : index
    %118 = vector.load %arg9[%c0_54, %c0_55] : memref<8x8xf32, #tpu.memory_space<vmem>>, vector<8x8xf32>
    tpu.vector_store %arg9[%c0_54, %c0_55], %117 {strides = array<i32>} : memref<8x8xf32, #tpu.memory_space<vmem>>, vector<8x8xf32>,
    %119 = vector.extract_strided_slice %116 {offsets = [0, 0], sizes = [8, 8], strides = [1, 1]} : vector<8x128xf32> to vector<8x8xf32>
    %c0_56 = arith.constant 0 : index
    %c0_57 = arith.constant 0 : index
    %120 = vector.load %arg10[%c0_56, %c0_57] : memref<8x8xf32, #tpu.memory_space<vmem>>, vector<8x8xf32>
    tpu.vector_store %arg10[%c0_56, %c0_57], %119 {strides = array<i32>} : memref<8x8xf32, #tpu.memory_space<vmem>>, vector<8x8xf32>,
    %121 = tpu.concatenate %27, %61, %95 in 1 : vector<8x1xf32>, vector<8x1xf32>, vector<8x1xf32> -> vector<8x3xf32>
    %c0_58 = arith.constant 0 : index
    %c0_59 = arith.constant 0 : index
    %122 = vector.load %arg11[%c0_58, %c0_59] : memref<8x3xf32, #tpu.memory_space<vmem>>, vector<8x3xf32>
    tpu.vector_store %arg11[%c0_58, %c0_59], %121 {strides = array<i32>} : memref<8x3xf32, #tpu.memory_space<vmem>>, vector<8x3xf32>,
    return
  }
}

</mosaic_0001>

<llo_original>
// kernel: tpu_custom_call.1
$region0: #{tpu_custom_call.1}
  #allocation0 [shape = 'u32[]', space=smem, size = 0x4, offset = 0x4, fixed_abs, tag = 'smem constant byte address 0x4 - core index']
  #allocation1 [shape = 'u32[144,128]{1,0:T(1,128)}', space=vmem, size = 0x12000, scoped, tag = 'internal scratch']
  %s0 = inlined_call_operand.hbm [shape: f32[8,16], index: 0, kind: input, shape index: {}]
  %s1 = inlined_call_operand.hbm [shape: f32[8,128], index: 1, kind: input, shape index: {}]
  %s2 = inlined_call_operand.hbm [shape: f32[8,128], index: 2, kind: input, shape index: {}]
  %s3 = inlined_call_operand.hbm [shape: f32[3,8,128], index: 3, kind: input, shape index: {}]
  %s4 = inlined_call_operand.hbm [shape: f32[16,128], index: 4, kind: input, shape index: {}]
  %s5 = inlined_call_operand.hbm [shape: f32[128,128], index: 5, kind: input, shape index: {}]
  %s6 = inlined_call_operand.hbm [shape: f32[128,128], index: 6, kind: input, shape index: {}]
  %s7 = inlined_call_operand.vmem [shape: f32[1,128], index: 7, kind: input, shape index: {}]
  %s8 = inlined_call_operand.vmem [shape: f32[1,128], index: 8, kind: input, shape index: {}]
  %s9 = inlined_call_operand.hbm [shape: f32[8,8], index: 9, kind: output, shape index: {0}]
  %s10 = inlined_call_operand.hbm [shape: f32[8,8], index: 10, kind: output, shape index: {1}]
  %s11 = inlined_call_operand.vmem [shape: f32[8,3], index: 11, kind: output, shape index: {2}]
  %12 = xla_tuple %s9, %s10, %s11
  %s13 = sld [smem:[#allocation0]]
  $region90: #{tpu_custom_call.1} parent=0
    _
  %s15 = ssub.s32 1, %s13
  %s16 = scalar_select 0, %s15, %s13
  $region1: #{tpu_custom_call.1} parent=0
    #allocation2 [shape = 'u8[4096]{0}', space=vmem, size = 0x1000, scoped, tag = 'input window, operand 0, single buffered']
    #allocation3 [shape = 's32[1]{0}', space=sflag, size = 0x4, scoped, tag = 'scoped memory for tpu_custom_call.1']
    #allocation4 [shape = 's32[1]{0}', space=sflag, size = 0x4, scoped, tag = 'scoped memory for tpu_custom_call.1']
    #allocation5 [shape = 'u8[4096]{0}', space=vmem, size = 0x1000, scoped, tag = 'input window, operand 1, single buffered']
    #allocation6 [shape = 's32[1]{0}', space=sflag, size = 0x4, scoped, tag = 'scoped memory for tpu_custom_call.1']
    #allocation7 [shape = 'u8[4096]{0}', space=vmem, size = 0x1000, scoped, tag = 'input window, operand 2, single buffered']
    #allocation8 [shape = 'u8[12288]{0}', space=vmem, size = 0x3000, scoped, tag = 'input window, operand 3, single buffered']
    #allocation9 [shape = 's32[1]{0}', space=sflag, size = 0x4, scoped, tag = 'scoped memory for tpu_custom_call.1']
    #allocation10 [shape = 'u8[8192]{0}', space=vmem, size = 0x2000, scoped, tag = 'input window, operand 4, single buffered']
    #allocation11 [shape = 'u8[65536]{0}', space=vmem, size = 0x10000, scoped, tag = 'input window, operand 5, single buffered']
    #allocation12 [shape = 's32[1]{0}', space=sflag, size = 0x4, scoped, tag = 'scoped memory for tpu_custom_call.1']
    #allocation13 [shape = 'u8[65536]{0}', space=vmem, size = 0x10000, scoped, tag = 'input window, operand 6, single buffered']
    #allocation14 [shape = 'u8[4096]{0}', space=vmem, size = 0x1000, scoped, tag = 'output window, operand 0, single buffered']
    #allocation15 [shape = 'u8[4096]{0}', space=vmem, size = 0x1000, scoped, tag = 'output window, operand 1, single buffered']
    #allocation16 [shape = 's32[1]{0}', space=sflag, size = 0x4, scoped, tag = 'scoped memory for tpu_custom_call.1']
    %17 = vsyncpa [#allocation3], 0
    %18 = vsyncpa [#allocation6], 0
    %19 = vsyncpa [#allocation9], 0
    %20 = vsyncpa [#allocation12], 0
    %21 = vsyncpa [#allocation4], 0
    %22 = vsyncpa [#allocation16], 0
    // Predicated region
    $region2: #{tpu_custom_call.1} parent=1 // pred_check
      _
    $region3: #{tpu_custom_call.1} parent=1 // pred_check_branch
      %24 = sbr.rel (0) target = $region5
    $region4: #{tpu_custom_call.1} parent=1 // pred_region
      %s26 = ssub.s32 128, 128
      %27 = vsyncadd [#allocation3], %s26
      %s29 = sshll.u32 [#allocation2], 4
      %s30 = int_to_ptr.vmem [resolvable:$true] %s29
      %32 = dma.hbm_to_vmem [thread:$0]  %s0, 128, %s30, [#allocation3]
    $region5: #{tpu_custom_call.1} parent=1 // pred_fallthru
      _
    // Predicated region
    $region6: #{tpu_custom_call.1} parent=1 // pred_check
      _
    $region7: #{tpu_custom_call.1} parent=1 // pred_check_branch
      %34 = sbr.rel (0) target = $region9
    $region8: #{tpu_custom_call.1} parent=1 // pred_region
      %s36 = ssub.s32 128, 128
      %37 = vsyncadd [#allocation6], %s36
      %s39 = sshll.u32 [#allocation5], 4
      %s40 = int_to_ptr.vmem [resolvable:$true] %s39
      %42 = dma.hbm_to_vmem [thread:$0]  %s1, 128, %s40, [#allocation6]
    $region9: #{tpu_custom_call.1} parent=1 // pred_fallthru
      _
    // Predicated region
    $region10: #{tpu_custom_call.1} parent=1 // pred_check
      _
    $region11: #{tpu_custom_call.1} parent=1 // pred_check_branch
      %44 = sbr.rel (0) target = $region13
    $region12: #{tpu_custom_call.1} parent=1 // pred_region
      %s46 = ssub.s32 128, 128
      %47 = vsyncadd [#allocation6], %s46
      %s49 = sshll.u32 [#allocation7], 4
      %s50 = int_to_ptr.vmem [resolvable:$true] %s49
      %52 = dma.hbm_to_vmem [thread:$0]  %s2, 128, %s50, [#allocation6]
    $region13: #{tpu_custom_call.1} parent=1 // pred_fallthru
      _
    // Predicated region
    $region14: #{tpu_custom_call.1} parent=1 // pred_check
      _
    $region15: #{tpu_custom_call.1} parent=1 // pred_check_branch
      %54 = sbr.rel (0) target = $region17
    $region16: #{tpu_custom_call.1} parent=1 // pred_region
      %s56 = ssub.s32 384, 384
      %57 = vsyncadd [#allocation9], %s56
      %s58 = sshll.u32 [#allocation8], 4
      %s59 = int_to_ptr.vmem [resolvable:$true] %s58
      %64 = dma.hbm_to_vmem [thread:$0]  %s3, 384, %s59, [#allocation9], 128, 128, 8
    $region17: #{tpu_custom_call.1} parent=1 // pred_fallthru
      _
    // Predicated region
    $region18: #{tpu_custom_call.1} parent=1 // pred_check
      _
    $region19: #{tpu_custom_call.1} parent=1 // pred_check_branch
      %66 = sbr.rel (0) target = $region21
    $region20: #{tpu_custom_call.1} parent=1 // pred_region
      %s68 = ssub.s32 256, 256
      %69 = vsyncadd [#allocation9], %s68
      %s70 = sshll.u32 [#allocation10], 4
      %s71 = int_to_ptr.vmem [resolvable:$true] %s70
      %76 = dma.hbm_to_vmem [thread:$0]  %s4, 256, %s71, [#allocation9], 128, 128, 8
    $region21: #{tpu_custom_call.1} parent=1 // pred_fallthru
      _
    // Predicated region
    $region22: #{tpu_custom_call.1} parent=1 // pred_check
      _
    $region23: #{tpu_custom_call.1} parent=1 // pred_check_branch
      %78 = sbr.rel (0) target = $region25
    $region24: #{tpu_custom_call.1} parent=1 // pred_region
      %s80 = ssub.s32 2048, 2048
      %81 = vsyncadd [#allocation12], %s80
      %s82 = sshll.u32 [#allocation11], 4
      %s83 = int_to_ptr.vmem [resolvable:$true] %s82
      %88 = dma.hbm_to_vmem [thread:$0]  %s5, 2048, %s83, [#allocation12], 128, 128, 8
    $region25: #{tpu_custom_call.1} parent=1 // pred_fallthru
      _
    // Predicated region
    $region26: #{tpu_custom_call.1} parent=1 // pred_check
      _
    $region27: #{tpu_custom_call.1} parent=1 // pred_check_branch
      %90 = sbr.rel (0) target = $region29
    $region28: #{tpu_custom_call.1} parent=1 // pred_region
      %s92 = ssub.s32 2048, 2048
      %93 = vsyncadd [#allocation12], %s92
      %s94 = sshll.u32 [#allocation13], 4
      %s95 = int_to_ptr.vmem [resolvable:$true] %s94
      %100 = dma.hbm_to_vmem [thread:$0]  %s6, 2048, %s95, [#allocation12], 128, 128, 8
    $region29: #{tpu_custom_call.1} parent=1 // pred_fallthru
      _
    // Predicated region
    $region30: #{tpu_custom_call.1} parent=1 // pred_check
      _
    $region31: #{tpu_custom_call.1} parent=1 // pred_check_branch
      %102 = sbr.rel (0) target = $region33
    $region32: #{tpu_custom_call.1} parent=1 // pred_region
      _
    $region33: #{tpu_custom_call.1} parent=1 // pred_fallthru
      _
    // Predicated region
    $region34: #{tpu_custom_call.1} parent=1 // pred_check
      _
    $region35: #{tpu_custom_call.1} parent=1 // pred_check_branch
      %104 = sbr.rel (0) target = $region37
    $region36: #{tpu_custom_call.1} parent=1 // pred_region
      _
    $region37: #{tpu_custom_call.1} parent=1 // pred_fallthru
      _
    // Predicated region
    $region38: #{tpu_custom_call.1} parent=1 // pred_check
      _
    $region39: #{tpu_custom_call.1} parent=1 // pred_check_branch
      %106 = sbr.rel (0) target = $region41
    $region40: #{tpu_custom_call.1} parent=1 // pred_region
      %107 = dma.done [#allocation3], 128
    $region41: #{tpu_custom_call.1} parent=1 // pred_fallthru
      _
    // Predicated region
    $region42: #{tpu_custom_call.1} parent=1 // pred_check
      _
    $region43: #{tpu_custom_call.1} parent=1 // pred_check_branch
      %109 = sbr.rel (0) target = $region45
    $region44: #{tpu_custom_call.1} parent=1 // pred_region
      %110 = dma.done [#allocation6], 128
    $region45: #{tpu_custom_call.1} parent=1 // pred_fallthru
      _
    // Predicated region
    $region46: #{tpu_custom_call.1} parent=1 // pred_check
      _
    $region47: #{tpu_custom_call.1} parent=1 // pred_check_branch
      %112 = sbr.rel (0) target = $region49
    $region48: #{tpu_custom_call.1} parent=1 // pred_region
      %113 = dma.done [#allocation6], 128
    $region49: #{tpu_custom_call.1} parent=1 // pred_fallthru
      _
    // Predicated region
    $region50: #{tpu_custom_call.1} parent=1 // pred_check
      _
    $region51: #{tpu_custom_call.1} parent=1 // pred_check_branch
      %115 = sbr.rel (0) target = $region53
    $region52: #{tpu_custom_call.1} parent=1 // pred_region
      %116 = dma.done [#allocation9], 384
    $region53: #{tpu_custom_call.1} parent=1 // pred_fallthru
      _
    // Predicated region
    $region54: #{tpu_custom_call.1} parent=1 // pred_check
      _
    $region55: #{tpu_custom_call.1} parent=1 // pred_check_branch
      %118 = sbr.rel (0) target = $region57
    $region56: #{tpu_custom_call.1} parent=1 // pred_region
      %119 = dma.done [#allocation9], 256
    $region57: #{tpu_custom_call.1} parent=1 // pred_fallthru
      _
    // Predicated region
    $region58: #{tpu_custom_call.1} parent=1 // pred_check
      _
    $region59: #{tpu_custom_call.1} parent=1 // pred_check_branch
      %121 = sbr.rel (0) target = $region61
    $region60: #{tpu_custom_call.1} parent=1 // pred_region
      %122 = dma.done [#allocation12], 2048
    $region61: #{tpu_custom_call.1} parent=1 // pred_fallthru
      _
    // Predicated region
    $region62: #{tpu_custom_call.1} parent=1 // pred_check
      _
    $region63: #{tpu_custom_call.1} parent=1 // pred_check_branch
      %124 = sbr.rel (0) target = $region65
    $region64: #{tpu_custom_call.1} parent=1 // pred_region
      %125 = dma.done [#allocation12], 2048
    $region65: #{tpu_custom_call.1} parent=1 // pred_fallthru
      _
    %v126 = vld [vmem:[#allocation2] sm:$0xff]
    %v127 = vld [vmem:[#allocation10] sm:$0xff]
    %v128 = vld [vmem:[#allocation10 + $0x8] sm:$0xff]
    %v129 = vld [vmem:[%s7] sm:$0x1]
    %v131 = vlaneseq
    %v132 = vshrl.u32 %v131, 7
    %v133 = vsub.s32 0, %v132
    %v134 = vrot.slane %v129, %v133
    %vm136 = vcmask 130048
    %v138 = vsel %vm136, %v126, 0
    %140 = vmatprep.subr.mxu0 0.0
    %141 = vmatpush1.msra.mxu0 0.0
    %142 = vmatprep.subr.mxu0 0.0
    %143 = vmatpush1.msra.mxu0 0.0
    %144 = vmatprep.subr.mxu0 0.0
    %145 = vmatpush1.msra.mxu0 0.0
    %146 = vmatprep.subr.mxu0 0.0
    %147 = vmatpush1.msra.mxu0 0.0
    %148 = vmatprep.subr.mxu0 0.0
    %149 = vmatpush1.msra.mxu0 0.0
    %150 = vmatprep.subr.mxu0 0.0
    %151 = vmatpush1.msra.mxu0 0.0
    %152 = vmatprep.subr.mxu0 0.0
    %153 = vmatpush1.msra.mxu0 0.0
    %154 = vmatprep.subr.mxu0 0.0
    %155 = vmatpush1.msra.mxu0 0.0
    %156 = vmatprep.subr.mxu0 0.0
    %157 = vmatpush1.msra.mxu0 0.0
    %158 = vmatprep.subr.mxu0 0.0
    %159 = vmatpush1.msra.mxu0 0.0
    %160 = vmatprep.subr.mxu0 0.0
    %161 = vmatpush1.msra.mxu0 0.0
    %162 = vmatprep.subr.mxu0 0.0
    %163 = vmatpush1.msra.mxu0 0.0
    %164 = vmatprep.subr.mxu0 0.0
    %165 = vmatpush1.msra.mxu0 0.0
    %166 = vmatprep.subr.mxu0 0.0
    %167 = vmatpush1.msra.mxu0 0.0
    %168 = vmatprep.subr.mxu0 0.0
    %169 = vmatpush1.msra.mxu0 %v128
    %170 = vmatprep.subr.mxu0 0.0
    %171 = vmatpush1.msra.mxu0 %v127
    %172 = vmatprep.subr.mxu0 0.0
    %173 = vmatpush2.msra.mxu0 0.0
    %174 = vmatprep.subr.mxu0 0.0
    %175 = vmatpush2.msra.mxu0 0.0
    %176 = vmatprep.subr.mxu0 0.0
    %177 = vmatpush2.msra.mxu0 0.0
    %178 = vmatprep.subr.mxu0 0.0
    %179 = vmatpush2.msra.mxu0 0.0
    %180 = vmatprep.subr.mxu0 0.0
    %181 = vmatpush2.msra.mxu0 0.0
    %182 = vmatprep.subr.mxu0 0.0
    %183 = vmatpush2.msra.mxu0 0.0
    %184 = vmatprep.subr.mxu0 0.0
    %185 = vmatpush2.msra.mxu0 0.0
    %186 = vmatprep.subr.mxu0 0.0
    %187 = vmatpush2.msra.mxu0 0.0
    %188 = vmatprep.subr.mxu0 0.0
    %189 = vmatpush2.msra.mxu0 0.0
    %190 = vmatprep.subr.mxu0 0.0
    %191 = vmatpush2.msra.mxu0 0.0
    %192 = vmatprep.subr.mxu0 0.0
    %193 = vmatpush2.msra.mxu0 0.0
    %194 = vmatprep.subr.mxu0 0.0
    %195 = vmatpush2.msra.mxu0 0.0
    %196 = vmatprep.subr.mxu0 0.0
    %197 = vmatpush2.msra.mxu0 0.0
    %198 = vmatprep.subr.mxu0 0.0
    %199 = vmatpush2.msra.mxu0 0.0
    %200 = vmatprep.subr.mxu0 0.0
    %201 = vmatpush2.msra.mxu0 0.0
    %202 = vmatprep.subr.mxu0 0.0
    %203 = vmatpush2.msra.mxu0 0.0
    %204 = vmatprep.mubr.f32.mxu0 0.0
    %205 = vmatmul.mubr.f32.gmra.mxu0 %v138
    %v206 = vpop.f32.mrf.mxu0
    %v207 = vadd.f32 %v134, %v206
    %v208 = vpop.f32.mrf.mxu0
    %209 = vdwg.mxu0
    %v210 = vld [vmem:[#allocation11] sm:$0xff]
    %v211 = vld [vmem:[#allocation11 + $0x8] sm:$0xff]
    %v212 = vld [vmem:[#allocation11 + $0x10] sm:$0xff]
    %v213 = vld [vmem:[#allocation11 + $0x18] sm:$0xff]
    %v214 = vld [vmem:[#allocation11 + $0x20] sm:$0xff]
    %v215 = vld [vmem:[#allocation11 + $0x28] sm:$0xff]
    %v216 = vld [vmem:[#allocation11 + $0x30] sm:$0xff]
    %v217 = vld [vmem:[#allocation11 + $0x38] sm:$0xff]
    %v218 = vld [vmem:[#allocation11 + $0x40] sm:$0xff]
    %v219 = vld [vmem:[#allocation11 + $0x48] sm:$0xff]
    %v220 = vld [vmem:[#allocation11 + $0x50] sm:$0xff]
    %v221 = vld [vmem:[#allocation11 + $0x58] sm:$0xff]
    %v222 = vld [vmem:[#allocation11 + $0x60] sm:$0xff]
    %v223 = vld [vmem:[#allocation11 + $0x68] sm:$0xff]
    %v224 = vld [vmem:[#allocation11 + $0x70] sm:$0xff]
    %v225 = vld [vmem:[#allocation11 + $0x78] sm:$0xff]
    %v226 = vld [vmem:[#allocation13] sm:$0xff]
    %v227 = vld [vmem:[#allocation13 + $0x8] sm:$0xff]
    %v228 = vld [vmem:[#allocation13 + $0x10] sm:$0xff]
    %v229 = vld [vmem:[#allocation13 + $0x18] sm:$0xff]
    %v230 = vld [vmem:[#allocation13 + $0x20] sm:$0xff]
    %v231 = vld [vmem:[#allocation13 + $0x28] sm:$0xff]
    %v232 = vld [vmem:[#allocation13 + $0x30] sm:$0xff]
    %v233 = vld [vmem:[#allocation13 + $0x38] sm:$0xff]
    %v234 = vld [vmem:[#allocation13 + $0x40] sm:$0xff]
    %v235 = vld [vmem:[#allocation13 + $0x48] sm:$0xff]
    %v236 = vld [vmem:[#allocation13 + $0x50] sm:$0xff]
    %v237 = vld [vmem:[#allocation13 + $0x58] sm:$0xff]
    %v238 = vld [vmem:[#allocation13 + $0x60] sm:$0xff]
    %v239 = vld [vmem:[#allocation13 + $0x68] sm:$0xff]
    %v240 = vld [vmem:[#allocation13 + $0x70] sm:$0xff]
    %v241 = vld [vmem:[#allocation13 + $0x78] sm:$0xff]
    %v242 = vld [vmem:[%s8] sm:$0x1]
    %v244 = vlaneseq
    %v245 = vshrl.u32 %v244, 7
    %v246 = vsub.s32 0, %v245
    %v247 = vrot.slane %v242, %v246
    %v249 = vmul.f32 %v247, -0.25
    %v250 = vld [vmem:[#allocation5] sm:$0xff]
    %v251 = vld [vmem:[#allocation7] sm:$0xff]
    %v252 = vmul.f32 %v251, 1.442695
    %v253 = vpow.pop %v252
    %v254 = vld [vmem:[#allocation8] sm:$0xff]
    %v255 = vmul.f32 %v253, %v254
    %v256 = vadd.f32 %v250, %v255
    %257 = vmatprep.subr.mxu0 0.0
    %258 = vmatpush1.msra.mxu0 %v225
    %259 = vmatprep.subr.mxu0 0.0
    %260 = vmatpush1.msra.mxu0 %v224
    %261 = vmatprep.subr.mxu0 0.0
    %262 = vmatpush1.msra.mxu0 %v223
    %263 = vmatprep.subr.mxu0 0.0
    %264 = vmatpush1.msra.mxu0 %v222
    %265 = vmatprep.subr.mxu0 0.0
    %266 = vmatpush1.msra.mxu0 %v221
    %267 = vmatprep.subr.mxu0 0.0
    %268 = vmatpush1.msra.mxu0 %v220
    %269 = vmatprep.subr.mxu0 0.0
    %270 = vmatpush1.msra.mxu0 %v219
    %271 = vmatprep.subr.mxu0 0.0
    %272 = vmatpush1.msra.mxu0 %v218
    %273 = vmatprep.subr.mxu0 0.0
    %274 = vmatpush1.msra.mxu0 %v217
    %275 = vmatprep.subr.mxu0 0.0
    %276 = vmatpush1.msra.mxu0 %v216
    %277 = vmatprep.subr.mxu0 0.0
    %278 = vmatpush1.msra.mxu0 %v215
    %279 = vmatprep.subr.mxu0 0.0
    %280 = vmatpush1.msra.mxu0 %v214
    %281 = vmatprep.subr.mxu0 0.0
    %282 = vmatpush1.msra.mxu0 %v213
    %283 = vmatprep.subr.mxu0 0.0
    %284 = vmatpush1.msra.mxu0 %v212
    %285 = vmatprep.subr.mxu0 0.0
    %286 = vmatpush1.msra.mxu0 %v211
    %287 = vmatprep.subr.mxu0 0.0
    %288 = vmatpush1.msra.mxu0 %v210
    %289 = vmatprep.subr.mxu0 0.0
    %290 = vmatpush2.msra.mxu0 0.0
    %291 = vmatprep.subr.mxu0 0.0
    %292 = vmatpush2.msra.mxu0 0.0
    %293 = vmatprep.subr.mxu0 0.0
    %294 = vmatpush2.msra.mxu0 0.0
    %295 = vmatprep.subr.mxu0 0.0
    %296 = vmatpush2.msra.mxu0 0.0
    %297 = vmatprep.subr.mxu0 0.0
    %298 = vmatpush2.msra.mxu0 0.0
    %299 = vmatprep.subr.mxu0 0.0
    %300 = vmatpush2.msra.mxu0 0.0
    %301 = vmatprep.subr.mxu0 0.0
    %302 = vmatpush2.msra.mxu0 0.0
    %303 = vmatprep.subr.mxu0 0.0
    %304 = vmatpush2.msra.mxu0 0.0
    %305 = vmatprep.subr.mxu0 0.0
    %306 = vmatpush2.msra.mxu0 0.0
    %307 = vmatprep.subr.mxu0 0.0
    %308 = vmatpush2.msra.mxu0 0.0
    %309 = vmatprep.subr.mxu0 0.0
    %310 = vmatpush2.msra.mxu0 0.0
    %311 = vmatprep.subr.mxu0 0.0
    %312 = vmatpush2.msra.mxu0 0.0
    %313 = vmatprep.subr.mxu0 0.0
    %314 = vmatpush2.msra.mxu0 0.0
    %315 = vmatprep.subr.mxu0 0.0
    %316 = vmatpush2.msra.mxu0 0.0
    %317 = vmatprep.subr.mxu0 0.0
    %318 = vmatpush2.msra.mxu0 0.0
    %319 = vmatprep.subr.mxu0 0.0
    %320 = vmatpush2.msra.mxu0 0.0
    %321 = vmatprep.mubr.f32.mxu0 0.0
    %322 = vmatmul.mubr.f32.gmra.mxu0 %v256
    %v323 = vpop.f32.mrf.mxu0
    %v324 = vadd.f32 0.0, %v323
    %v325 = vpop.f32.mrf.mxu0
    %326 = vdwg.mxu0
    %v327 = vadd.f32 %v207, %v324
    %v328 = vtanh.pop %v327
    %v329 = vmul.f32 %v328, %v247
    %330 = vadd.xlane.f32.xlu0 %v329
    %v331 = vpop.xlane.xlu0 %330
    %v332 = vmul.f32 %v331, -0.25
    %v333 = vmul.f32 %v328, %v328
    %v334 = vsub.f32 1.0, %v333
    %v335 = vmul.f32 %v334, %v249
    %336 = vmatprep.subr.mxu0 0.0
    %337 = vmatpush1.msra.mxu0 %v241
    %338 = vmatprep.subr.mxu0 0.0
    %339 = vmatpush1.msra.mxu0 %v240
    %340 = vmatprep.subr.mxu0 0.0
    %341 = vmatpush1.msra.mxu0 %v239
    %342 = vmatprep.subr.mxu0 0.0
    %343 = vmatpush1.msra.mxu0 %v238
    %344 = vmatprep.subr.mxu0 0.0
    %345 = vmatpush1.msra.mxu0 %v237
    %346 = vmatprep.subr.mxu0 0.0
    %347 = vmatpush1.msra.mxu0 %v236
    %348 = vmatprep.subr.mxu0 0.0
    %349 = vmatpush1.msra.mxu0 %v235
    %350 = vmatprep.subr.mxu0 0.0
    %351 = vmatpush1.msra.mxu0 %v234
    %352 = vmatprep.subr.mxu0 0.0
    %353 = vmatpush1.msra.mxu0 %v233
    %354 = vmatprep.subr.mxu0 0.0
    %355 = vmatpush1.msra.mxu0 %v232
    %356 = vmatprep.subr.mxu0 0.0
    %357 = vmatpush1.msra.mxu0 %v231
    %358 = vmatprep.subr.mxu0 0.0
    %359 = vmatpush1.msra.mxu0 %v230
    %360 = vmatprep.subr.mxu0 0.0
    %361 = vmatpush1.msra.mxu0 %v229
    %362 = vmatprep.subr.mxu0 0.0
    %363 = vmatpush1.msra.mxu0 %v228
    %364 = vmatprep.subr.mxu0 0.0
    %365 = vmatpush1.msra.mxu0 %v227
    %366 = vmatprep.subr.mxu0 0.0
    %367 = vmatpush1.msra.mxu0 %v226
    %368 = vmatprep.subr.mxu0 0.0
    %369 = vmatpush2.msra.mxu0 0.0
    %370 = vmatprep.subr.mxu0 0.0
    %371 = vmatpush2.msra.mxu0 0.0
    %372 = vmatprep.subr.mxu0 0.0
    %373 = vmatpush2.msra.mxu0 0.0
    %374 = vmatprep.subr.mxu0 0.0
    %375 = vmatpush2.msra.mxu0 0.0
    %376 = vmatprep.subr.mxu0 0.0
    %377 = vmatpush2.msra.mxu0 0.0
    %378 = vmatprep.subr.mxu0 0.0
    %379 = vmatpush2.msra.mxu0 0.0
    %380 = vmatprep.subr.mxu0 0.0
    %381 = vmatpush2.msra.mxu0 0.0
    %382 = vmatprep.subr.mxu0 0.0
    %383 = vmatpush2.msra.mxu0 0.0
    %384 = vmatprep.subr.mxu0 0.0
    %385 = vmatpush2.msra.mxu0 0.0
    %386 = vmatprep.subr.mxu0 0.0
    %387 = vmatpush2.msra.mxu0 0.0
    %388 = vmatprep.subr.mxu0 0.0
    %389 = vmatpush2.msra.mxu0 0.0
    %390 = vmatprep.subr.mxu0 0.0
    %391 = vmatpush2.msra.mxu0 0.0
    %392 = vmatprep.subr.mxu0 0.0
    %393 = vmatpush2.msra.mxu0 0.0
    %394 = vmatprep.subr.mxu0 0.0
    %395 = vmatpush2.msra.mxu0 0.0
    %396 = vmatprep.subr.mxu0 0.0
    %397 = vmatpush2.msra.mxu0 0.0
    %398 = vmatprep.subr.mxu0 0.0
    %399 = vmatpush2.msra.mxu0 0.0
    %400 = vmatprep.mubr.f32.mxu0 0.0
    %401 = vmatmul.mubr.f32.gmra.mxu0 %v335
    %v402 = vpop.f32.mrf.mxu0
    %v403 = vadd.f32 0.0, %v402
    %v404 = vpop.f32.mrf.mxu0
    %405 = vdwg.mxu0
    %406 = vrot.lane.b32.xlu0 %v403, 64
    %v407 = vpop.permute.xlu0 %406
    %v408 = vadd.f32 %v403, %v407
    %409 = vrot.lane.b32.xlu0 %v408, 32
    %v410 = vpop.permute.xlu0 %409
    %v411 = vadd.f32 %v408, %v410
    %v412 = vmul.f32 %v403, %v254
    %413 = vrot.lane.b32.xlu0 %v412, 64
    %v414 = vpop.permute.xlu0 %413
    %v415 = vadd.f32 %v412, %v414
    %416 = vrot.lane.b32.xlu0 %v415, 32
    %v417 = vpop.permute.xlu0 %416
    %v418 = vadd.f32 %v415, %v417
    %v419 = vmul.f32 %v253, %v418
    %v420 = vmul.f32 %v411, 0.1
    %v421 = vsub.f32 %v250, %v420
    %v422 = vmul.f32 %v419, 0.1
    %v423 = vsub.f32 %v251, %v422
    %v424 = vmul.f32 %v423, 1.442695
    %v425 = vpow.pop %v424
    %s426 = scalar_lea.vmem [#allocation8], 8
    %v427 = vld [vmem:[%s426] sm:$0xff]
    %v428 = vmul.f32 %v425, %v427
    %v429 = vadd.f32 %v421, %v428
    %430 = vmatprep.subr.mxu0 0.0
    %431 = vmatpush1.msra.mxu0 %v225
    %432 = vmatprep.subr.mxu0 0.0
    %433 = vmatpush1.msra.mxu0 %v224
    %434 = vmatprep.subr.mxu0 0.0
    %435 = vmatpush1.msra.mxu0 %v223
    %436 = vmatprep.subr.mxu0 0.0
    %437 = vmatpush1.msra.mxu0 %v222
    %438 = vmatprep.subr.mxu0 0.0
    %439 = vmatpush1.msra.mxu0 %v221
    %440 = vmatprep.subr.mxu0 0.0
    %441 = vmatpush1.msra.mxu0 %v220
    %442 = vmatprep.subr.mxu0 0.0
    %443 = vmatpush1.msra.mxu0 %v219
    %444 = vmatprep.subr.mxu0 0.0
    %445 = vmatpush1.msra.mxu0 %v218
    %446 = vmatprep.subr.mxu0 0.0
    %447 = vmatpush1.msra.mxu0 %v217
    %448 = vmatprep.subr.mxu0 0.0
    %449 = vmatpush1.msra.mxu0 %v216
    %450 = vmatprep.subr.mxu0 0.0
    %451 = vmatpush1.msra.mxu0 %v215
    %452 = vmatprep.subr.mxu0 0.0
    %453 = vmatpush1.msra.mxu0 %v214
    %454 = vmatprep.subr.mxu0 0.0
    %455 = vmatpush1.msra.mxu0 %v213
    %456 = vmatprep.subr.mxu0 0.0
    %457 = vmatpush1.msra.mxu0 %v212
    %458 = vmatprep.subr.mxu0 0.0
    %459 = vmatpush1.msra.mxu0 %v211
    %460 = vmatprep.subr.mxu0 0.0
    %461 = vmatpush1.msra.mxu0 %v210
    %462 = vmatprep.subr.mxu0 0.0
    %463 = vmatpush2.msra.mxu0 0.0
    %464 = vmatprep.subr.mxu0 0.0
    %465 = vmatpush2.msra.mxu0 0.0
    %466 = vmatprep.subr.mxu0 0.0
    %467 = vmatpush2.msra.mxu0 0.0
    %468 = vmatprep.subr.mxu0 0.0
    %469 = vmatpush2.msra.mxu0 0.0
    %470 = vmatprep.subr.mxu0 0.0
    %471 = vmatpush2.msra.mxu0 0.0
    %472 = vmatprep.subr.mxu0 0.0
    %473 = vmatpush2.msra.mxu0 0.0
    %474 = vmatprep.subr.mxu0 0.0
    %475 = vmatpush2.msra.mxu0 0.0
    %476 = vmatprep.subr.mxu0 0.0
    %477 = vmatpush2.msra.mxu0 0.0
    %478 = vmatprep.subr.mxu0 0.0
    %479 = vmatpush2.msra.mxu0 0.0
    %480 = vmatprep.subr.mxu0 0.0
    %481 = vmatpush2.msra.mxu0 0.0
    %482 = vmatprep.subr.mxu0 0.0
    %483 = vmatpush2.msra.mxu0 0.0
    %484 = vmatprep.subr.mxu0 0.0
    %485 = vmatpush2.msra.mxu0 0.0
    %486 = vmatprep.subr.mxu0 0.0
    %487 = vmatpush2.msra.mxu0 0.0
    %488 = vmatprep.subr.mxu0 0.0
    %489 = vmatpush2.msra.mxu0 0.0
    %490 = vmatprep.subr.mxu0 0.0
    %491 = vmatpush2.msra.mxu0 0.0
    %492 = vmatprep.subr.mxu0 0.0
    %493 = vmatpush2.msra.mxu0 0.0
    %494 = vmatprep.mubr.f32.mxu0 0.0
    %495 = vmatmul.mubr.f32.gmra.mxu0 %v429
    %v496 = vpop.f32.mrf.mxu0
    %v497 = vadd.f32 0.0, %v496
    %v498 = vpop.f32.mrf.mxu0
    %499 = vdwg.mxu0
    %v500 = vadd.f32 %v207, %v497
    %v501 = vtanh.pop %v500
    %v502 = vmul.f32 %v501, %v247
    %503 = vadd.xlane.f32.xlu0 %v502
    %v504 = vpop.xlane.xlu0 %503
    %v505 = vmul.f32 %v504, -0.25
    %v506 = vmul.f32 %v501, %v501
    %v507 = vsub.f32 1.0, %v506
    %v508 = vmul.f32 %v507, %v249
    %509 = vmatprep.subr.mxu0 0.0
    %510 = vmatpush1.msra.mxu0 %v241
    %511 = vmatprep.subr.mxu0 0.0
    %512 = vmatpush1.msra.mxu0 %v240
    %513 = vmatprep.subr.mxu0 0.0
    %514 = vmatpush1.msra.mxu0 %v239
    %515 = vmatprep.subr.mxu0 0.0
    %516 = vmatpush1.msra.mxu0 %v238
    %517 = vmatprep.subr.mxu0 0.0
    %518 = vmatpush1.msra.mxu0 %v237
    %519 = vmatprep.subr.mxu0 0.0
    %520 = vmatpush1.msra.mxu0 %v236
    %521 = vmatprep.subr.mxu0 0.0
    %522 = vmatpush1.msra.mxu0 %v235
    %523 = vmatprep.subr.mxu0 0.0
    %524 = vmatpush1.msra.mxu0 %v234
    %525 = vmatprep.subr.mxu0 0.0
    %526 = vmatpush1.msra.mxu0 %v233
    %527 = vmatprep.subr.mxu0 0.0
    %528 = vmatpush1.msra.mxu0 %v232
    %529 = vmatprep.subr.mxu0 0.0
    %530 = vmatpush1.msra.mxu0 %v231
    %531 = vmatprep.subr.mxu0 0.0
    %532 = vmatpush1.msra.mxu0 %v230
    %533 = vmatprep.subr.mxu0 0.0
    %534 = vmatpush1.msra.mxu0 %v229
    %535 = vmatprep.subr.mxu0 0.0
    %536 = vmatpush1.msra.mxu0 %v228
    %537 = vmatprep.subr.mxu0 0.0
    %538 = vmatpush1.msra.mxu0 %v227
    %539 = vmatprep.subr.mxu0 0.0
    %540 = vmatpush1.msra.mxu0 %v226
    %541 = vmatprep.subr.mxu0 0.0
    %542 = vmatpush2.msra.mxu0 0.0
    %543 = vmatprep.subr.mxu0 0.0
    %544 = vmatpush2.msra.mxu0 0.0
    %545 = vmatprep.subr.mxu0 0.0
    %546 = vmatpush2.msra.mxu0 0.0
    %547 = vmatprep.subr.mxu0 0.0
    %548 = vmatpush2.msra.mxu0 0.0
    %549 = vmatprep.subr.mxu0 0.0
    %550 = vmatpush2.msra.mxu0 0.0
    %551 = vmatprep.subr.mxu0 0.0
    %552 = vmatpush2.msra.mxu0 0.0
    %553 = vmatprep.subr.mxu0 0.0
    %554 = vmatpush2.msra.mxu0 0.0
    %555 = vmatprep.subr.mxu0 0.0
    %556 = vmatpush2.msra.mxu0 0.0
    %557 = vmatprep.subr.mxu0 0.0
    %558 = vmatpush2.msra.mxu0 0.0
    %559 = vmatprep.subr.mxu0 0.0
    %560 = vmatpush2.msra.mxu0 0.0
    %561 = vmatprep.subr.mxu0 0.0
    %562 = vmatpush2.msra.mxu0 0.0
    %563 = vmatprep.subr.mxu0 0.0
    %564 = vmatpush2.msra.mxu0 0.0
    %565 = vmatprep.subr.mxu0 0.0
    %566 = vmatpush2.msra.mxu0 0.0
    %567 = vmatprep.subr.mxu0 0.0
    %568 = vmatpush2.msra.mxu0 0.0
    %569 = vmatprep.subr.mxu0 0.0
    %570 = vmatpush2.msra.mxu0 0.0
    %571 = vmatprep.subr.mxu0 0.0
    %572 = vmatpush2.msra.mxu0 0.0
    %573 = vmatprep.mubr.f32.mxu0 0.0
    %574 = vmatmul.mubr.f32.gmra.mxu0 %v508
    %v575 = vpop.f32.mrf.mxu0
    %v576 = vadd.f32 0.0, %v575
    %v577 = vpop.f32.mrf.mxu0
    %578 = vdwg.mxu0
    %579 = vrot.lane.b32.xlu0 %v576, 64
    %v580 = vpop.permute.xlu0 %579
    %v581 = vadd.f32 %v576, %v580
    %582 = vrot.lane.b32.xlu0 %v581, 32
    %v583 = vpop.permute.xlu0 %582
    %v584 = vadd.f32 %v581, %v583
    %v585 = vmul.f32 %v576, %v427
    %586 = vrot.lane.b32.xlu0 %v585, 64
    %v587 = vpop.permute.xlu0 %586
    %v588 = vadd.f32 %v585, %v587
    %589 = vrot.lane.b32.xlu0 %v588, 32
    %v590 = vpop.permute.xlu0 %589
    %v591 = vadd.f32 %v588, %v590
    %v592 = vmul.f32 %v425, %v591
    %v593 = vmul.f32 %v584, 0.1
    %v594 = vsub.f32 %v421, %v593
    %v595 = vmul.f32 %v592, 0.1
    %v596 = vsub.f32 %v423, %v595
    %v597 = vmul.f32 %v596, 1.442695
    %v598 = vpow.pop %v597
    %s599 = scalar_lea.vmem [#allocation8], 16
    %v600 = vld [vmem:[%s599] sm:$0xff]
    %v601 = vmul.f32 %v598, %v600
    %v602 = vadd.f32 %v594, %v601
    %603 = vmatprep.subr.mxu0 0.0
    %604 = vmatpush1.msra.mxu0 %v225
    %605 = vmatprep.subr.mxu0 0.0
    %606 = vmatpush1.msra.mxu0 %v224
    %607 = vmatprep.subr.mxu0 0.0
    %608 = vmatpush1.msra.mxu0 %v223
    %609 = vmatprep.subr.mxu0 0.0
    %610 = vmatpush1.msra.mxu0 %v222
    %611 = vmatprep.subr.mxu0 0.0
    %612 = vmatpush1.msra.mxu0 %v221
    %613 = vmatprep.subr.mxu0 0.0
    %614 = vmatpush1.msra.mxu0 %v220
    %615 = vmatprep.subr.mxu0 0.0
    %616 = vmatpush1.msra.mxu0 %v219
    %617 = vmatprep.subr.mxu0 0.0
    %618 = vmatpush1.msra.mxu0 %v218
    %619 = vmatprep.subr.mxu0 0.0
    %620 = vmatpush1.msra.mxu0 %v217
    %621 = vmatprep.subr.mxu0 0.0
    %622 = vmatpush1.msra.mxu0 %v216
    %623 = vmatprep.subr.mxu0 0.0
    %624 = vmatpush1.msra.mxu0 %v215
    %625 = vmatprep.subr.mxu0 0.0
    %626 = vmatpush1.msra.mxu0 %v214
    %627 = vmatprep.subr.mxu0 0.0
    %628 = vmatpush1.msra.mxu0 %v213
    %629 = vmatprep.subr.mxu0 0.0
    %630 = vmatpush1.msra.mxu0 %v212
    %631 = vmatprep.subr.mxu0 0.0
    %632 = vmatpush1.msra.mxu0 %v211
    %633 = vmatprep.subr.mxu0 0.0
    %634 = vmatpush1.msra.mxu0 %v210
    %635 = vmatprep.subr.mxu0 0.0
    %636 = vmatpush2.msra.mxu0 0.0
    %637 = vmatprep.subr.mxu0 0.0
    %638 = vmatpush2.msra.mxu0 0.0
    %639 = vmatprep.subr.mxu0 0.0
    %640 = vmatpush2.msra.mxu0 0.0
    %641 = vmatprep.subr.mxu0 0.0
    %642 = vmatpush2.msra.mxu0 0.0
    %643 = vmatprep.subr.mxu0 0.0
    %644 = vmatpush2.msra.mxu0 0.0
    %645 = vmatprep.subr.mxu0 0.0
    %646 = vmatpush2.msra.mxu0 0.0
    %647 = vmatprep.subr.mxu0 0.0
    %648 = vmatpush2.msra.mxu0 0.0
    %649 = vmatprep.subr.mxu0 0.0
    %650 = vmatpush2.msra.mxu0 0.0
    %651 = vmatprep.subr.mxu0 0.0
    %652 = vmatpush2.msra.mxu0 0.0
    %653 = vmatprep.subr.mxu0 0.0
    %654 = vmatpush2.msra.mxu0 0.0
    %655 = vmatprep.subr.mxu0 0.0
    %656 = vmatpush2.msra.mxu0 0.0
    %657 = vmatprep.subr.mxu0 0.0
    %658 = vmatpush2.msra.mxu0 0.0
    %659 = vmatprep.subr.mxu0 0.0
    %660 = vmatpush2.msra.mxu0 0.0
    %661 = vmatprep.subr.mxu0 0.0
    %662 = vmatpush2.msra.mxu0 0.0
    %663 = vmatprep.subr.mxu0 0.0
    %664 = vmatpush2.msra.mxu0 0.0
    %665 = vmatprep.subr.mxu0 0.0
    %666 = vmatpush2.msra.mxu0 0.0
    %667 = vmatprep.mubr.f32.mxu0 0.0
    %668 = vmatmul.mubr.f32.gmra.mxu0 %v602
    %v669 = vpop.f32.mrf.mxu0
    %v670 = vadd.f32 0.0, %v669
    %v671 = vpop.f32.mrf.mxu0
    %672 = vdwg.mxu0
    %v673 = vadd.f32 %v207, %v670
    %v674 = vtanh.pop %v673
    %v675 = vmul.f32 %v674, %v247
    %676 = vadd.xlane.f32.xlu0 %v675
    %v677 = vpop.xlane.xlu0 %676
    %v678 = vmul.f32 %v677, -0.25
    %v679 = vmul.f32 %v674, %v674
    %v680 = vsub.f32 1.0, %v679
    %v681 = vmul.f32 %v680, %v249
    %682 = vmatprep.subr.mxu0 0.0
    %683 = vmatpush1.msra.mxu0 %v241
    %684 = vmatprep.subr.mxu0 0.0
    %685 = vmatpush1.msra.mxu0 %v240
    %686 = vmatprep.subr.mxu0 0.0
    %687 = vmatpush1.msra.mxu0 %v239
    %688 = vmatprep.subr.mxu0 0.0
    %689 = vmatpush1.msra.mxu0 %v238
    %690 = vmatprep.subr.mxu0 0.0
    %691 = vmatpush1.msra.mxu0 %v237
    %692 = vmatprep.subr.mxu0 0.0
    %693 = vmatpush1.msra.mxu0 %v236
    %694 = vmatprep.subr.mxu0 0.0
    %695 = vmatpush1.msra.mxu0 %v235
    %696 = vmatprep.subr.mxu0 0.0
    %697 = vmatpush1.msra.mxu0 %v234
    %698 = vmatprep.subr.mxu0 0.0
    %699 = vmatpush1.msra.mxu0 %v233
    %700 = vmatprep.subr.mxu0 0.0
    %701 = vmatpush1.msra.mxu0 %v232
    %702 = vmatprep.subr.mxu0 0.0
    %703 = vmatpush1.msra.mxu0 %v231
    %704 = vmatprep.subr.mxu0 0.0
    %705 = vmatpush1.msra.mxu0 %v230
    %706 = vmatprep.subr.mxu0 0.0
    %707 = vmatpush1.msra.mxu0 %v229
    %708 = vmatprep.subr.mxu0 0.0
    %709 = vmatpush1.msra.mxu0 %v228
    %710 = vmatprep.subr.mxu0 0.0
    %711 = vmatpush1.msra.mxu0 %v227
    %712 = vmatprep.subr.mxu0 0.0
    %713 = vmatpush1.msra.mxu0 %v226
    %714 = vmatprep.subr.mxu0 0.0
    %715 = vmatpush2.msra.mxu0 0.0
    %716 = vmatprep.subr.mxu0 0.0
    %717 = vmatpush2.msra.mxu0 0.0
    %718 = vmatprep.subr.mxu0 0.0
    %719 = vmatpush2.msra.mxu0 0.0
    %720 = vmatprep.subr.mxu0 0.0
    %721 = vmatpush2.msra.mxu0 0.0
    %722 = vmatprep.subr.mxu0 0.0
    %723 = vmatpush2.msra.mxu0 0.0
    %724 = vmatprep.subr.mxu0 0.0
    %725 = vmatpush2.msra.mxu0 0.0
    %726 = vmatprep.subr.mxu0 0.0
    %727 = vmatpush2.msra.mxu0 0.0
    %728 = vmatprep.subr.mxu0 0.0
    %729 = vmatpush2.msra.mxu0 0.0
    %730 = vmatprep.subr.mxu0 0.0
    %731 = vmatpush2.msra.mxu0 0.0
    %732 = vmatprep.subr.mxu0 0.0
    %733 = vmatpush2.msra.mxu0 0.0
    %734 = vmatprep.subr.mxu0 0.0
    %735 = vmatpush2.msra.mxu0 0.0
    %736 = vmatprep.subr.mxu0 0.0
    %737 = vmatpush2.msra.mxu0 0.0
    %738 = vmatprep.subr.mxu0 0.0
    %739 = vmatpush2.msra.mxu0 0.0
    %740 = vmatprep.subr.mxu0 0.0
    %741 = vmatpush2.msra.mxu0 0.0
    %742 = vmatprep.subr.mxu0 0.0
    %743 = vmatpush2.msra.mxu0 0.0
    %744 = vmatprep.subr.mxu0 0.0
    %745 = vmatpush2.msra.mxu0 0.0
    %746 = vmatprep.mubr.f32.mxu0 0.0
    %747 = vmatmul.mubr.f32.gmra.mxu0 %v681
    %v748 = vpop.f32.mrf.mxu0
    %v749 = vadd.f32 0.0, %v748
    %v750 = vpop.f32.mrf.mxu0
    %751 = vdwg.mxu0
    %752 = vrot.lane.b32.xlu0 %v749, 64
    %v753 = vpop.permute.xlu0 %752
    %v754 = vadd.f32 %v749, %v753
    %755 = vrot.lane.b32.xlu0 %v754, 32
    %v756 = vpop.permute.xlu0 %755
    %v757 = vadd.f32 %v754, %v756
    %v758 = vmul.f32 %v749, %v600
    %759 = vrot.lane.b32.xlu0 %v758, 64
    %v760 = vpop.permute.xlu0 %759
    %v761 = vadd.f32 %v758, %v760
    %762 = vrot.lane.b32.xlu0 %v761, 32
    %v763 = vpop.permute.xlu0 %762
    %v764 = vadd.f32 %v761, %v763
    %v765 = vmul.f32 %v598, %v764
    %v766 = vmul.f32 %v757, 0.1
    %v767 = vsub.f32 %v594, %v766
    %v768 = vmul.f32 %v765, 0.1
    %v769 = vsub.f32 %v596, %v768
    %vm770 = vcmask 64512
    %771 = vst.msk [vmem:[#allocation14] sm:$0xff] %vm770, %v767
    %772 = vst.msk [vmem:[#allocation15] sm:$0xff] %vm770, %v769
    %vm773 = vcmask 7168
    %v774 = vsel %vm773, %v332, %v505
    %vm775 = vcmask 15360
    %v776 = vsel %vm775, %v774, %v678
    %vm777 = vcmask 23552
    %778 = vst.msk [vmem:[%s11] sm:$0xff] %vm777, %v776
    // Predicated region
    $region66: #{tpu_custom_call.1} parent=1 // pred_check
      _
    $region67: #{tpu_custom_call.1} parent=1 // pred_check_branch
      %780 = sbr.rel (0) target = $region69
    $region68: #{tpu_custom_call.1} parent=1 // pred_region
      %s782 = ssub.s32 128, 128
      %783 = vsyncadd [#allocation4], %s782
      %s785 = sshll.u32 [#allocation14], 4
      %s786 = int_to_ptr.vmem [resolvable:$true] %s785
      %788 = dma.vmem_to_hbm [thread:$0]  %s786, 128, %s9, [#allocation4]
    $region69: #{tpu_custom_call.1} parent=1 // pred_fallthru
      _
    // Predicated region
    $region70: #{tpu_custom_call.1} parent=1 // pred_check
      _
    $region71: #{tpu_custom_call.1} parent=1 // pred_check_branch
      %790 = sbr.rel (0) target = $region73
    $region72: #{tpu_custom_call.1} parent=1 // pred_region
      %s792 = ssub.s32 128, 128
      %793 = vsyncadd [#allocation16], %s792
      %s795 = sshll.u32 [#allocation15], 4
      %s796 = int_to_ptr.vmem [resolvable:$true] %s795
      %798 = dma.vmem_to_hbm [thread:$0]  %s796, 128, %s10, [#allocation16]
    $region73: #{tpu_custom_call.1} parent=1 // pred_fallthru
      _
    // Predicated region
    $region74: #{tpu_custom_call.1} parent=1 // pred_check
      _
    $region75: #{tpu_custom_call.1} parent=1 // pred_check_branch
      %800 = sbr.rel (0) target = $region77
    $region76: #{tpu_custom_call.1} parent=1 // pred_region
      _
    $region77: #{tpu_custom_call.1} parent=1 // pred_fallthru
      _
    // Predicated region
    $region78: #{tpu_custom_call.1} parent=1 // pred_check
      _
    $region79: #{tpu_custom_call.1} parent=1 // pred_check_branch
      %802 = sbr.rel (0) target = $region81
    $region80: #{tpu_custom_call.1} parent=1 // pred_region
      %803 = dma.done [#allocation4], 128
    $region81: #{tpu_custom_call.1} parent=1 // pred_fallthru
      _
    // Predicated region
    $region82: #{tpu_custom_call.1} parent=1 // pred_check
      _
    $region83: #{tpu_custom_call.1} parent=1 // pred_check_branch
      %805 = sbr.rel (0) target = $region85
    $region84: #{tpu_custom_call.1} parent=1 // pred_region
      %806 = dma.done [#allocation16], 128
    $region85: #{tpu_custom_call.1} parent=1 // pred_fallthru
      _
    // Predicated region
    $region86: #{tpu_custom_call.1} parent=1 // pred_check
      _
    $region87: #{tpu_custom_call.1} parent=1 // pred_check_branch
      %808 = sbr.rel (0) target = $region89
    $region88: #{tpu_custom_call.1} parent=1 // pred_region
      _
    $region89: #{tpu_custom_call.1} parent=1 // pred_fallthru
      _
    %809 = vsyncpa [#allocation3], 1
    %810 = vsyncpa [#allocation6], 1
    %811 = vsyncpa [#allocation9], 1
    %812 = vsyncpa [#allocation12], 1
    %813 = vsyncpa [#allocation4], 1
    %814 = vsyncpa [#allocation16], 1

</llo_original>
